<compile_context>
chip_gen: v7x
topology: tpu7x:2x2x1
jax: 0.10.0
libtpu: 0.0.40
codegen_flags: <defaults>
</compile_context>

<pallas_src>
import functools
import math

import jax
import jax.numpy as jnp
from jax.experimental import pallas as pl
from jax.experimental.pallas import tpu as pltpu

_LANE = 128
_TR_MAX = 1024  # rows per grid step; 1024*128*4B = 512 KiB per input block


def _focal_kernel(x_ref, t_ref, out_ref, acc_ref, *,
                  alpha0, alpha1, gamma, smooth, n_valid, tr, nbh, masked):
    c = pl.program_id(0)   # core split axis ("parallel")
    i = pl.program_id(1)   # row-block axis  ("arbitrary" / reduction)

    @pl.when(i == 0)
    def _():
        acc_ref[...] = jnp.zeros_like(acc_ref)

    x = x_ref[...].astype(jnp.float32)
    t = t_ref[...].astype(jnp.float32)

    if masked:
        # Global element index of every lane in this *logical* block. Fully
        # out-of-range logical blocks were clamped onto real data by the
        # index map; mask them (and any ragged tail / edge-block garbage) off.
        blk = c * nbh + i
        row = jax.lax.broadcasted_iota(jnp.int32, (tr, _LANE), 0)
        col = jax.lax.broadcasted_iota(jnp.int32, (tr, _LANE), 1)
        gidx = blk * (tr * _LANE) + row * _LANE + col
        valid = gidx < n_valid
        x = jnp.where(valid, x, 0.0)    # sanitize possible garbage (NaN/inf)
        t = jnp.where(valid, t, -1.0)   # neither pos (==1) nor neg (==0)

    # Clip in logit space (equivalent to clamping prob to [smooth, 1-smooth]);
    # then log(1 - prob) = log(prob) - x exactly, saving one transcendental.
    lo = math.log(smooth) - math.log1p(-smooth)
    xc = jnp.clip(x, lo, -lo)
    prob = jax.nn.sigmoid(xc)
    logp = jnp.log(prob)
    log1mp = logp - xc

    pos_mask = (t == 1.0).astype(jnp.float32)
    neg_mask = (t == 0.0).astype(jnp.float32)

    pos_loss = (-alpha0) * jax.lax.integer_pow(1.0 - prob, gamma) * logp * pos_mask
    neg_loss = (-alpha1) * jax.lax.integer_pow(prob, gamma) * log1mp * neg_mask

    # Per-lane partial sums; cross-lane reduction is deferred to the wrapper.
    acc_ref[0:1, :] += jnp.sum(pos_loss, axis=0, keepdims=True)
    acc_ref[1:2, :] += jnp.sum(neg_loss, axis=0, keepdims=True)
    acc_ref[2:3, :] += jnp.sum(pos_mask, axis=0, keepdims=True)
    acc_ref[3:4, :] += jnp.sum(neg_mask, axis=0, keepdims=True)

    @pl.when(i == pl.num_programs(1) - 1)
    def _():
        out_ref[...] = acc_ref[...].reshape(1, 4, _LANE)


@functools.partial(jax.jit, static_argnames=("alpha", "gamma", "smooth"))
def binary_focal_loss(output, target, alpha=(1.0, 1.0), gamma=2, smooth=1e-6):
    """Pallas TPU implementation of BinaryFocalLoss.forward (the reference
    forward always returns the combined scalar regardless of `reduction`)."""
    alpha0, alpha1 = float(alpha[0]), float(alpha[1])
    gamma = int(gamma)
    smooth = float(smooth)

    x = output.reshape(-1)
    t = target.reshape(-1)
    n = x.shape[0]

    rows = -(-n // _LANE)
    pad = rows * _LANE - n
    if pad:  # only needed when the flat size is not a multiple of 128
        x = jnp.pad(x, (0, pad))
        t = jnp.pad(t, (0, pad))
    x2 = x.reshape(rows, _LANE)
    t2 = t.reshape(rows, _LANE)

    tr = rows if rows < _TR_MAX else _TR_MAX
    nbt = -(-rows // tr)            # total row-blocks
    ncores = 2 if nbt >= 2 else 1   # split over both TCs (v7x); 1-TC chips: serial
    nbh = -(-nbt // ncores)         # row-blocks per core
    masked = (ncores * nbh * tr * _LANE) != n

    kernel = functools.partial(
        _focal_kernel, alpha0=alpha0, alpha1=alpha1, gamma=gamma, smooth=smooth,
        n_valid=n, tr=tr, nbh=nbh, masked=masked)

    def in_map(c, i):
        # Clamp fully-out-of-range logical blocks onto the last real block;
        # their contribution is masked off inside the kernel.
        return (jnp.minimum(c * nbh + i, nbt - 1), 0)

    partials = pl.pallas_call(
        kernel,
        out_shape=jax.ShapeDtypeStruct((ncores, 4, _LANE), jnp.float32),
        grid_spec=pltpu.PrefetchScalarGridSpec(
            num_scalar_prefetch=0,
            grid=(ncores, nbh),
            in_specs=[pl.BlockSpec((tr, _LANE), in_map),
                      pl.BlockSpec((tr, _LANE), in_map)],
            out_specs=pl.BlockSpec((1, 4, _LANE), lambda c, i: (c, 0, 0)),
            scratch_shapes=[pltpu.VMEM((4, _LANE), jnp.float32)],
        ),
        compiler_params=pltpu.CompilerParams(
            dimension_semantics=("parallel", "arbitrary")),
    )(x2, t2)

    sums = jnp.sum(partials, axis=(0, 2))  # (4,): pos_loss, neg_loss, n_pos, n_neg
    pos_sum, neg_sum, num_pos, num_neg = sums[0], sums[1], sums[2], sums[3]
    combined = pos_sum / num_pos + neg_sum / num_neg
    return jnp.where(num_pos == 0.0, neg_sum, combined)


def binary_focal_loss_ref(output, target, alpha=(1.0, 1.0), gamma=2, smooth=1e-6):
    prob = jnp.clip(jax.nn.sigmoid(output.astype(jnp.float32)), smooth, 1.0 - smooth)
    t = target.astype(jnp.float32)
    pos_mask = (t == 1.0).astype(jnp.float32)
    neg_mask = (t == 0.0).astype(jnp.float32)
    pos_loss = (-alpha[0] * ((1.0 - prob) ** gamma) * jnp.log(prob) * pos_mask).sum()
    neg_loss = (-alpha[1] * (prob ** gamma) * jnp.log(1.0 - prob) * neg_mask).sum()
    num_pos = pos_mask.sum()
    num_neg = neg_mask.sum()
    return jnp.where(num_pos == 0.0, neg_loss, pos_loss / num_pos + neg_loss / num_neg)


def _check(logits, target):
    loss = jax.block_until_ready(binary_focal_loss(logits, target, alpha=(1.0, 1.0), gamma=2))
    ref = binary_focal_loss_ref(logits, target, alpha=(1.0, 1.0), gamma=2)
    assert jnp.allclose(loss, ref, rtol=5e-5, atol=1e-5), (loss, ref)


if __name__ == "__main__":
    key = jax.random.PRNGKey(0)

    # Main case: dense binary segmentation head, N=2, C=4, H=W=16 (even tiling).
    k1, k2 = jax.random.split(key)
    logits = jax.random.normal(k1, (2, 4, 16, 16), dtype=jnp.float32)
    target = jax.random.bernoulli(k2, p=0.3, shape=(2, 4, 16, 16)).astype(jnp.float32)
    _check(logits, target)

    # Ragged case: flat size not a multiple of 128 (exercises pad + validity mask).
    k3, k4 = jax.random.split(k1)
    lg2 = jax.random.normal(k3, (2, 3, 7, 5), dtype=jnp.float32)
    tg2 = jax.random.bernoulli(k4, p=0.3, shape=(2, 3, 7, 5)).astype(jnp.float32)
    _check(lg2, tg2)

    # Multi-block case with odd block count (exercises 2-core split + clamped
    # index map + edge-block masking).
    k5, k6 = jax.random.split(k2)
    lg3 = jax.random.normal(k5, (2, 4, 210, 160), dtype=jnp.float32)
    tg3 = jax.random.bernoulli(k6, p=0.3, shape=(2, 4, 210, 160)).astype(jnp.float32)
    _check(lg3, tg3)

    # num_pos == 0 branch.
    _check(logits, jnp.zeros_like(target))

    print("KERNEL_OK")
</pallas_src>

<mosaic_0001>
module attributes {stable_mosaic.version = 11 : i64} {
  func.func @_focal_kernel(%arg0: i32, %arg1: i32, %arg2: memref<16x128xf32, #tpu.memory_space<vmem>>, %arg3: memref<16x128xf32, #tpu.memory_space<vmem>>, %arg4: memref<1x4x128xf32, #tpu.memory_space<vmem>>, %arg5: memref<4x128xf32, #tpu.memory_space<vmem>>) attributes {dimension_semantics = [#tpu.dimension_semantics<parallel>, #tpu.dimension_semantics<arbitrary>], iteration_bounds = array<i64: 1, 1>, scalar_prefetch = 0 : i64, scratch_operands = 1 : i64, tpu.core_type = #tpu.core_type<tc>, window_params = [{transform_indices = @transform_0, window_bounds = array<i64: 16, 128>}, {transform_indices = @transform_1, window_bounds = array<i64: 16, 128>}, {transform_indices = @transform_2, window_bounds = array<i64: 1, 4, 128>}]} {
    %c0_i32 = arith.constant 0 : i32
    %0 = arith.cmpi eq, %arg1, %c0_i32 : i32
    %1 = arith.extui %0 : i1 to i32
    %c0_i32_0 = arith.constant 0 : i32
    %2 = arith.cmpi ne, %1, %c0_i32_0 : i32
    scf.if %2 {
      %cst_30 = arith.constant 0.000000e+00 : f32
      %59 = vector.broadcast %cst_30 : f32 to vector<4x128xf32>
      %c0_31 = arith.constant 0 : index
      %c0_32 = arith.constant 0 : index
      %60 = vector.load %arg5[%c0_31, %c0_32] : memref<4x128xf32, #tpu.memory_space<vmem>>, vector<4x128xf32>
      tpu.vector_store %arg5[%c0_31, %c0_32], %59 {strides = array<i32>} : memref<4x128xf32, #tpu.memory_space<vmem>>, vector<4x128xf32>,
    } else {
    }
    %c0 = arith.constant 0 : index
    %c0_1 = arith.constant 0 : index
    %3 = vector.load %arg2[%c0, %c0_1] : memref<16x128xf32, #tpu.memory_space<vmem>>, vector<16x128xf32>
    %c0_2 = arith.constant 0 : index
    %c0_3 = arith.constant 0 : index
    %4 = vector.load %arg3[%c0_2, %c0_3] : memref<16x128xf32, #tpu.memory_space<vmem>>, vector<16x128xf32>
    %cst = arith.constant -13.8155098 : f32
    %cst_4 = arith.constant 13.8155098 : f32
    %5 = vector.broadcast %cst : f32 to vector<16x128xf32>
    %6 = arith.maximumf %5, %3 : vector<16x128xf32>
    %7 = vector.broadcast %cst_4 : f32 to vector<16x128xf32>
    %8 = arith.minimumf %7, %6 : vector<16x128xf32>
    %9 = arith.negf %8 : vector<16x128xf32>
    %10 = math.exp %9 : vector<16x128xf32>
    %cst_5 = arith.constant 1.000000e+00 : f32
    %11 = vector.broadcast %cst_5 : f32 to vector<16x128xf32>
    %12 = arith.addf %11, %10 : vector<16x128xf32>
    %13 = arith.divf %11, %12 : vector<16x128xf32>
    %14 = math.log %13 : vector<16x128xf32>
    %15 = arith.subf %14, %8 : vector<16x128xf32>
    %cst_6 = arith.constant 1.000000e+00 : f32
    %16 = vector.broadcast %cst_6 : f32 to vector<16x128xf32>
    %17 = arith.cmpf oeq, %4, %16 : vector<16x128xf32>
    %18 = arith.extui %17 : vector<16x128xi1> to vector<16x128xi32>
    %19 = arith.sitofp %18 : vector<16x128xi32> to vector<16x128xf32>
    %cst_7 = arith.constant 0.000000e+00 : f32
    %20 = vector.broadcast %cst_7 : f32 to vector<16x128xf32>
    %21 = arith.cmpf oeq, %4, %20 : vector<16x128xf32>
    %22 = arith.extui %21 : vector<16x128xi1> to vector<16x128xi32>
    %23 = arith.sitofp %22 : vector<16x128xi32> to vector<16x128xf32>
    %cst_8 = arith.constant 1.000000e+00 : f32
    %24 = vector.broadcast %cst_8 : f32 to vector<16x128xf32>
    %25 = arith.subf %24, %13 : vector<16x128xf32>
    %26 = arith.mulf %25, %25 : vector<16x128xf32>
    %cst_9 = arith.constant -1.000000e+00 : f32
    %27 = vector.broadcast %cst_9 : f32 to vector<16x128xf32>
    %28 = arith.mulf %27, %26 : vector<16x128xf32>
    %29 = arith.mulf %28, %14 : vector<16x128xf32>
    %30 = arith.mulf %29, %19 : vector<16x128xf32>
    %31 = arith.mulf %13, %13 : vector<16x128xf32>
    %cst_10 = arith.constant -1.000000e+00 : f32
    %32 = vector.broadcast %cst_10 : f32 to vector<16x128xf32>
    %33 = arith.mulf %32, %31 : vector<16x128xf32>
    %34 = arith.mulf %33, %15 : vector<16x128xf32>
    %35 = arith.mulf %34, %23 : vector<16x128xf32>
    %c0_11 = arith.constant 0 : index
    %c0_12 = arith.constant 0 : index
    %36 = vector.load %arg5[%c0_11, %c0_12] : memref<4x128xf32, #tpu.memory_space<vmem>>, vector<1x128xf32>
    %cst_13 = arith.constant dense<0.000000e+00> : vector<128xf32>
    %37 = vector.multi_reduction <add>, %30, %cst_13 [0] : vector<16x128xf32> to vector<128xf32>
    %38 = vector.shape_cast %37 : vector<128xf32> to vector<1x128xf32>
    %39 = arith.addf %36, %38 : vector<1x128xf32>
    %c0_14 = arith.constant 0 : index
    %c0_15 = arith.constant 0 : index
    %40 = vector.load %arg5[%c0_14, %c0_15] : memref<4x128xf32, #tpu.memory_space<vmem>>, vector<1x128xf32>
    tpu.vector_store %arg5[%c0_14, %c0_15], %39 {strides = array<i32>} : memref<4x128xf32, #tpu.memory_space<vmem>>, vector<1x128xf32>,
    %c1 = arith.constant 1 : index
    %c0_16 = arith.constant 0 : index
    %41 = vector.load %arg5[%c1, %c0_16] : memref<4x128xf32, #tpu.memory_space<vmem>>, vector<1x128xf32>
    %cst_17 = arith.constant dense<0.000000e+00> : vector<128xf32>
    %42 = vector.multi_reduction <add>, %35, %cst_17 [0] : vector<16x128xf32> to vector<128xf32>
    %43 = vector.shape_cast %42 : vector<128xf32> to vector<1x128xf32>
    %44 = arith.addf %41, %43 : vector<1x128xf32>
    %c1_18 = arith.constant 1 : index
    %c0_19 = arith.constant 0 : index
    %45 = vector.load %arg5[%c1_18, %c0_19] : memref<4x128xf32, #tpu.memory_space<vmem>>, vector<1x128xf32>
    tpu.vector_store %arg5[%c1_18, %c0_19], %44 {strides = array<i32>} : memref<4x128xf32, #tpu.memory_space<vmem>>, vector<1x128xf32>,
    %c2 = arith.constant 2 : index
    %c0_20 = arith.constant 0 : index
    %46 = vector.load %arg5[%c2, %c0_20] : memref<4x128xf32, #tpu.memory_space<vmem>>, vector<1x128xf32>
    %cst_21 = arith.constant dense<0.000000e+00> : vector<128xf32>
    %47 = vector.multi_reduction <add>, %19, %cst_21 [0] : vector<16x128xf32> to vector<128xf32>
    %48 = vector.shape_cast %47 : vector<128xf32> to vector<1x128xf32>
    %49 = arith.addf %46, %48 : vector<1x128xf32>
    %c2_22 = arith.constant 2 : index
    %c0_23 = arith.constant 0 : index
    %50 = vector.load %arg5[%c2_22, %c0_23] : memref<4x128xf32, #tpu.memory_space<vmem>>, vector<1x128xf32>
    tpu.vector_store %arg5[%c2_22, %c0_23], %49 {strides = array<i32>} : memref<4x128xf32, #tpu.memory_space<vmem>>, vector<1x128xf32>,
    %c3 = arith.constant 3 : index
    %c0_24 = arith.constant 0 : index
    %51 = vector.load %arg5[%c3, %c0_24] : memref<4x128xf32, #tpu.memory_space<vmem>>, vector<1x128xf32>
    %cst_25 = arith.constant dense<0.000000e+00> : vector<128xf32>
    %52 = vector.multi_reduction <add>, %23, %cst_25 [0] : vector<16x128xf32> to vector<128xf32>
    %53 = vector.shape_cast %52 : vector<128xf32> to vector<1x128xf32>
    %54 = arith.addf %51, %53 : vector<1x128xf32>
    %c3_26 = arith.constant 3 : index
    %c0_27 = arith.constant 0 : index
    %55 = vector.load %arg5[%c3_26, %c0_27] : memref<4x128xf32, #tpu.memory_space<vmem>>, vector<1x128xf32>
    tpu.vector_store %arg5[%c3_26, %c0_27], %54 {strides = array<i32>} : memref<4x128xf32, #tpu.memory_space<vmem>>, vector<1x128xf32>,
    %c0_i32_28 = arith.constant 0 : i32
    %56 = arith.cmpi eq, %arg1, %c0_i32_28 : i32
    %57 = arith.extui %56 : i1 to i32
    %c0_i32_29 = arith.constant 0 : i32
    %58 = arith.cmpi ne, %57, %c0_i32_29 : i32
    scf.if %58 {
      %c0_30 = arith.constant 0 : index
      %c0_31 = arith.constant 0 : index
      %59 = vector.load %arg5[%c0_30, %c0_31] : memref<4x128xf32, #tpu.memory_space<vmem>>, vector<4x128xf32>
      %60 = vector.shape_cast %59 : vector<4x128xf32> to vector<1x4x128xf32>
      %c0_32 = arith.constant 0 : index
      %c0_33 = arith.constant 0 : index
      %c0_34 = arith.constant 0 : index
      %61 = vector.load %arg4[%c0_32, %c0_33, %c0_34] : memref<1x4x128xf32, #tpu.memory_space<vmem>>, vector<1x4x128xf32>
      tpu.vector_store %arg4[%c0_32, %c0_33, %c0_34], %60 {strides = array<i32>} : memref<1x4x128xf32, #tpu.memory_space<vmem>>, vector<1x4x128xf32>,
    } else {
    }
    return
  }
  func.func @transform_0(%arg0: i32, %arg1: i32) -> (i32, i32) {
    %c1_i32 = arith.constant 1 : i32
    %0 = arith.muli %arg0, %c1_i32 : i32
    %1 = arith.addi %0, %arg1 : i32
    %c0_i32 = arith.constant 0 : i32
    %2 = arith.minsi %1, %c0_i32 : i32
    %c0_i32_0 = arith.constant 0 : i32
    %c0_i32_1 = arith.constant 0 : i32
    return %2, %c0_i32_0 : i32, i32
  }
  func.func @transform_1(%arg0: i32, %arg1: i32) -> (i32, i32) {
    %c1_i32 = arith.constant 1 : i32
    %0 = arith.muli %arg0, %c1_i32 : i32
    %1 = arith.addi %0, %arg1 : i32
    %c0_i32 = arith.constant 0 : i32
    %2 = arith.minsi %1, %c0_i32 : i32
    %c0_i32_0 = arith.constant 0 : i32
    %c0_i32_1 = arith.constant 0 : i32
    return %2, %c0_i32_0 : i32, i32
  }
  func.func @transform_2(%arg0: i32, %arg1: i32) -> (i32, i32, i32) {
    %c0_i32 = arith.constant 0 : i32
    %c0_i32_0 = arith.constant 0 : i32
    %c0_i32_1 = arith.constant 0 : i32
    return %arg0, %c0_i32, %c0_i32_0 : i32, i32, i32
  }
}

</mosaic_0001>

<llo_original>
// kernel: binary_focal_loss.1
$region0: #{binary_focal_loss.1}
  #allocation0 [shape = 'u32[]', space=smem, size = 0x4, offset = 0x4, fixed_abs, tag = 'smem constant byte address 0x4 - core index']
  #allocation1 [shape = 'u32[144,128]{1,0:T(1,128)}', space=vmem, size = 0x12000, scoped, tag = 'internal scratch']
  #allocation2 [shape = 'f32[4,128]{1,0:T(4,128)}', space=vmem, size = 0x800, scoped, tag = 'scratch operand']
  %s0 = inlined_call_operand.vmem [shape: f32[16,128], index: 0, kind: input, shape index: {}]
  %s1 = inlined_call_operand.vmem [shape: f32[16,128], index: 1, kind: input, shape index: {}]
  %s2 = inlined_call_operand.vmem [shape: f32[1,4,128], index: 2, kind: output, shape index: {}]
  %s3 = sld [smem:[#allocation0]]
  $region26: #{binary_focal_loss.1} parent=0
    _
  %s5 = ssub.s32 1, %s3
  %s6 = scalar_select 0, %s5, %s3
  // Predicated region
  $region2: #{binary_focal_loss.1} parent=0 // pred_check
    _
  $region3: #{binary_focal_loss.1} parent=0 // pred_check_branch
    %8 = sbr.rel (0) target = $region5
  $region4: #{binary_focal_loss.1} parent=0 // pred_region
    %s9 = sadd.s32 0, 0
    %p10 = scmp.lt.s32.totalorder %s9, 0
    %s11 = scalar_select %p10, %s9, 0
    %s12 = smul.u32 2, %s11
    %p13 = scmp.lt.s32.totalorder %s12, 1
    %s14 = scalar_select %p13, %s12, 1
    %s15 = smul.addr %s14, 8
    %s16 = scalar_lea.vmem %s0, %s15
    %s17 = sadd.s32 0, 0
    %p18 = scmp.lt.s32.totalorder %s17, 0
    %s19 = scalar_select %p18, %s17, 0
    %s20 = smul.u32 2, %s19
  $region5: #{binary_focal_loss.1} parent=0 // pred_fallthru
    _
  // Predicated region
  $region6: #{binary_focal_loss.1} parent=0 // pred_check
    _
  $region7: #{binary_focal_loss.1} parent=0 // pred_check_branch
    %22 = sbr.rel (0) target = $region9
  $region8: #{binary_focal_loss.1} parent=0 // pred_region
    %s23 = sadd.s32 0, 0
    %p24 = scmp.lt.s32.totalorder %s23, 0
    %s25 = scalar_select %p24, %s23, 0
    %s26 = smul.u32 2, %s25
    %p27 = scmp.lt.s32.totalorder %s26, 1
    %s28 = scalar_select %p27, %s26, 1
    %s29 = smul.addr %s28, 8
    %s30 = scalar_lea.vmem %s1, %s29
    %s31 = sadd.s32 0, 0
    %p32 = scmp.lt.s32.totalorder %s31, 0
    %s33 = scalar_select %p32, %s31, 0
    %s34 = smul.u32 2, %s33
  $region9: #{binary_focal_loss.1} parent=0 // pred_fallthru
    _
  %s35 = sadd.s32 0, 0
  %p36 = scmp.lt.s32.totalorder %s35, 0
  %s37 = scalar_select %p36, %s35, 0
  %s38 = smul.u32 2, %s37
  %p39 = scmp.lt.s32.totalorder %s38, 1
  %s40 = scalar_select %p39, %s38, 1
  %s41 = smul.addr %s40, 8
  %s42 = scalar_lea.vmem %s0, %s41
  %s43 = sadd.s32 0, 0
  %p44 = scmp.lt.s32.totalorder %s43, 0
  %s45 = scalar_select %p44, %s43, 0
  %s46 = smul.u32 2, %s45
  %p47 = scmp.lt.s32.totalorder %s46, 1
  %s48 = scalar_select %p47, %s46, 1
  %s49 = smul.addr %s48, 8
  %s50 = scalar_lea.vmem %s1, %s49
  %s51 = sadd.s32 0, 0
  %p52 = scmp.lt.s32.totalorder %s51, 0
  %s53 = scalar_select %p52, %s51, 0
  %s54 = smul.u32 2, %s53
  %p55 = scmp.lt.s32.totalorder %s54, 1
  %s56 = scalar_select %p55, %s54, 1
  %s57 = smul.addr %s56, 8
  %s58 = scalar_lea.vmem %s0, %s57
  %s59 = sadd.s32 0, 0
  %p60 = scmp.lt.s32.totalorder %s59, 0
  %s61 = scalar_select %p60, %s59, 0
  %s62 = smul.u32 2, %s61
  %s63 = sadd.s32 0, 0
  %p64 = scmp.lt.s32.totalorder %s63, 0
  %s65 = scalar_select %p64, %s63, 0
  %s66 = smul.u32 2, %s65
  %p67 = scmp.lt.s32.totalorder %s66, 1
  %s68 = scalar_select %p67, %s66, 1
  %s69 = smul.addr %s68, 8
  %s70 = scalar_lea.vmem %s1, %s69
  %s71 = sadd.s32 0, 0
  %p72 = scmp.lt.s32.totalorder %s71, 0
  %s73 = scalar_select %p72, %s71, 0
  %s74 = smul.u32 2, %s73
  %p75 = scmp.eq.s32.totalorder 0, 0
  // Predicated region
  $region10: #{binary_focal_loss.1} parent=0 // pred_check
    %p76 = pneg %p75
  $region11: #{binary_focal_loss.1} parent=0 // pred_check_branch
    %78 = sbr.rel (%p76) target = $region13
  $region12: #{binary_focal_loss.1} parent=0 // pred_region
    %79 = vst [vmem:[#allocation2] sm:$0xf] 0.0
  $region13: #{binary_focal_loss.1} parent=0 // pred_fallthru
    _
  %v80 = vld [vmem:[%s58] sm:$0xff]
  %v81 = vld [vmem:[%s58 + $0x8] sm:$0xff]
  %v82 = vld [vmem:[%s70] sm:$0xff]
  %v83 = vld [vmem:[%s70 + $0x8] sm:$0xff]
  %v84 = vmax.f32 %v80, -13.81551
  %v85 = vmax.f32 %v81, -13.81551
  %v86 = vmin.f32 %v84, 13.81551
  %v87 = vmin.f32 %v85, 13.81551
  %v88 = vxor.u32 %v86, 2147483648
  %v89 = vxor.u32 %v87, 2147483648
  %v90 = vmul.f32 %v88, 1.442695
  %v91 = vpow.pop %v90
  %v92 = vmul.f32 %v89, 1.442695
  %v93 = vpow.pop %v92
  %v94 = vadd.f32 %v91, 1.0
  %v95 = vadd.f32 %v93, 1.0
  %v96 = vrcp.pop %v94
  %v97 = vmul.f32 1.0, %v96
  %v98 = vrcp.pop %v95
  %v99 = vmul.f32 1.0, %v98
  %v100 = vlog2.pop %v97
  %v101 = vmul.f32 %v100, 0.6931472
  %v102 = vlog2.pop %v99
  %v103 = vmul.f32 %v102, 0.6931472
  %v104 = vsub.f32 %v101, %v86
  %v105 = vsub.f32 %v103, %v87
  %vm106 = vcmp.eq.f32.partialorder %v82, 1.0
  %vm107 = vcmp.eq.f32.partialorder %v83, 1.0
  %v108 = vsel %vm106, 1, 0
  %v109 = vsel %vm107, 1, 0
  %v110 = vcvt.s32.f32 %v108
  %v111 = vcvt.s32.f32 %v109
  %vm112 = vcmp.eq.f32.partialorder %v82, 0.0
  %vm113 = vcmp.eq.f32.partialorder %v83, 0.0
  %v114 = vsel %vm112, 1, 0
  %v115 = vsel %vm113, 1, 0
  %v116 = vcvt.s32.f32 %v114
  %v117 = vcvt.s32.f32 %v115
  %v118 = vsub.f32 1.0, %v97
  %v119 = vsub.f32 1.0, %v99
  %v120 = vmul.f32 %v118, %v118
  %v121 = vmul.f32 %v119, %v119
  %v122 = vmul.f32 %v120, -1.0
  %v123 = vmul.f32 %v121, -1.0
  %v124 = vmul.f32 %v122, %v101
  %v125 = vmul.f32 %v123, %v103
  %v126 = vmul.f32 %v124, %v110
  %v127 = vmul.f32 %v125, %v111
  %v128 = vmul.f32 %v97, %v97
  %v129 = vmul.f32 %v99, %v99
  %v130 = vmul.f32 %v128, -1.0
  %v131 = vmul.f32 %v129, -1.0
  %v132 = vmul.f32 %v130, %v104
  %v133 = vmul.f32 %v131, %v105
  %v134 = vmul.f32 %v132, %v116
  %v135 = vmul.f32 %v133, %v117
  %v136 = vld [vmem:[#allocation2] sm:$0x1]
  %v137 = vadd.f32 %v126, %v127
  %v138 = vrot.slane %v137, 4
  %v139 = vadd.f32 %v137, %v138
  %v140 = vrot.slane %v139, 2
  %v141 = vadd.f32 %v139, %v140
  %v142 = vrot.slane %v141, 1
  %v143 = vadd.f32 %v141, %v142
  %v144 = vadd.f32 %v136, %v143
  %145 = vst [vmem:[#allocation2] sm:$0x1] %v144
  %v146 = vld [vmem:[#allocation2 + $0x1] sm:$0x1]
  %v147 = vadd.f32 %v134, %v135
  %v148 = vrot.slane %v147, 4
  %v149 = vadd.f32 %v147, %v148
  %v150 = vrot.slane %v149, 2
  %v151 = vadd.f32 %v149, %v150
  %v152 = vrot.slane %v151, 1
  %v153 = vadd.f32 %v151, %v152
  %v154 = vadd.f32 %v146, %v153
  %155 = vst [vmem:[#allocation2 + $0x1] sm:$0x1] %v154
  %v156 = vld [vmem:[#allocation2 + $0x2] sm:$0x1]
  %v157 = vadd.f32 %v110, %v111
  %v158 = vrot.slane %v157, 4
  %v159 = vadd.f32 %v157, %v158
  %v160 = vrot.slane %v159, 2
  %v161 = vadd.f32 %v159, %v160
  %v162 = vrot.slane %v161, 1
  %v163 = vadd.f32 %v161, %v162
  %v164 = vadd.f32 %v156, %v163
  %165 = vst [vmem:[#allocation2 + $0x2] sm:$0x1] %v164
  %v166 = vld [vmem:[#allocation2 + $0x3] sm:$0x1]
  %v167 = vadd.f32 %v116, %v117
  %v168 = vrot.slane %v167, 4
  %v169 = vadd.f32 %v167, %v168
  %v170 = vrot.slane %v169, 2
  %v171 = vadd.f32 %v169, %v170
  %v172 = vrot.slane %v171, 1
  %v173 = vadd.f32 %v171, %v172
  %v174 = vadd.f32 %v166, %v173
  %175 = vst [vmem:[#allocation2 + $0x3] sm:$0x1] %v174
  // Predicated region
  $region14: #{binary_focal_loss.1} parent=0 // pred_check
    %p176 = pneg %p75
  $region15: #{binary_focal_loss.1} parent=0 // pred_check_branch
    %178 = sbr.rel (%p176) target = $region17
  $region16: #{binary_focal_loss.1} parent=0 // pred_region
    %v179 = vld [vmem:[#allocation2] sm:$0xf]
    %180 = vst [vmem:[%s2] sm:$0xf] %v179
  $region17: #{binary_focal_loss.1} parent=0 // pred_fallthru
    _
  // Predicated region
  $region18: #{binary_focal_loss.1} parent=0 // pred_check
    _
  $region19: #{binary_focal_loss.1} parent=0 // pred_check_branch
    %182 = sbr.rel (0) target = $region21
  $region20: #{binary_focal_loss.1} parent=0 // pred_region
    _
  $region21: #{binary_focal_loss.1} parent=0 // pred_fallthru
    _
  // Predicated region
  $region22: #{binary_focal_loss.1} parent=0 // pred_check
    _
  $region23: #{binary_focal_loss.1} parent=0 // pred_check_branch
    %184 = sbr.rel (0) target = $region25
  $region24: #{binary_focal_loss.1} parent=0 // pred_region
    _
  $region25: #{binary_focal_loss.1} parent=0 // pred_fallthru
    _

</llo_original>
